<compile_context>
chip_gen: v6e
topology: v6e:2x2x1
jax: 0.10.0
libtpu: 0.0.40
codegen_flags: <defaults>
</compile_context>

<pallas_src>
import jax
import jax.numpy as jnp
from jax.experimental import pallas as pl
from jax.experimental.pallas import tpu as pltpu


def _negbin_mu_kernel(beta0_ref, beta_ref, x_ref, time_ref, b01_ref, mu_ref):
    """mu = softplus(beta_0 + sum_f beta[f]*X[f] + b_0 + b_1 * time).

    Layouts:
      beta0_ref: (1,)        SMEM scalar
      beta_ref : (F,)        SMEM scalars
      x_ref    : (F, tT, L)  VMEM (bf16 or f32; contracted axis F leads, L lane-dense)
      time_ref : (tT, L)     VMEM f32
      b01_ref  : (2, L)      VMEM f32 (row 0 = b_0, row 1 = b_1; broadcast over T)
      mu_ref   : (tT, L)     VMEM f32 — single lane-dense output stream
    """
    F = x_ref.shape[0]

    # fixed effects: beta_0 + einsum('tlf,f->tl', X, beta)
    # F is small -> static unrolled scalar-broadcast FMAs (pure VPU work).
    # Cast bf16->f32 per-slab right after load; all arithmetic in f32.
    # (If F ever grows into the dozens, reformulate as a (1,F)x(F,T*L)
    #  dot_general on the MXU instead of saturating the VALU slot.)
    acc = beta_ref[0] * x_ref[0].astype(jnp.float32) + beta0_ref[0]
    for f in range(1, F):
        acc = acc + beta_ref[f] * x_ref[f].astype(jnp.float32)

    # random intercepts / slopes, broadcast (1, L) -> (tT, L)
    b01 = b01_ref[...]                              # (2, L)
    log_mu = acc + b01[0:1, :] + b01[1:2, :] * time_ref[...]

    # numerically stable softplus
    mu_ref[...] = jnp.maximum(log_mu, 0.0) + jnp.log1p(jnp.exp(-jnp.abs(log_mu)))


def _pick_tile_t(T):
    """Tile T only when it is big enough to matter; keep tiles VMEM-friendly."""
    if T < 1024:
        return None
    for tt in (1024, 512, 256, 128, 64, 32, 16):
        if T % tt == 0:
            return tt
    return None


def negative_binomial_forward_ftl(x_ftl, time, beta_0, beta, b_0, b_1, siginv_theta):
    """Hot path. x_ftl: (F, T, L) (bf16 or f32). Returns (mu (T,L) f32, theta scalar f32)."""
    F, T, L = x_ftl.shape
    assert time.shape == (T, L), "time should have shape (num_time_points, num_locations)"
    assert beta.shape == (F,)
    assert b_0.shape == (L,) and b_1.shape == (L,)

    beta0 = beta_0.reshape(1).astype(jnp.float32)
    beta_f = beta.astype(jnp.float32)
    time_f = time.astype(jnp.float32)
    b01 = jnp.stack([b_0, b_1], axis=0).astype(jnp.float32)   # (2, L): one DMA, one tile

    x_bytes = x_ftl.size * x_ftl.dtype.itemsize
    cost = pl.CostEstimate(
        flops=2 * F * T * L + 8 * T * L,
        transcendentals=2 * T * L,
        bytes_accessed=x_bytes + 4 * T * L + 8 * L + 4 * (F + 1) + 4 * T * L,
    )

    tile_t = _pick_tile_t(T)
    if tile_t is None:
        # Small problem: one gridless call, whole-array VMEM blocks (no pipeline
        # prologue/epilogue for a degenerate grid).
        mu = pl.pallas_call(
            _negbin_mu_kernel,
            out_shape=jax.ShapeDtypeStruct((T, L), jnp.float32),
            in_specs=[
                pl.BlockSpec(memory_space=pltpu.MemorySpace.SMEM),   # beta_0 (1,)
                pl.BlockSpec(memory_space=pltpu.MemorySpace.SMEM),   # beta   (F,)
                pl.BlockSpec(memory_space=pltpu.MemorySpace.VMEM),   # X      (F, T, L)
                pl.BlockSpec(memory_space=pltpu.MemorySpace.VMEM),   # time   (T, L)
                pl.BlockSpec(memory_space=pltpu.MemorySpace.VMEM),   # b01    (2, L)
            ],
            out_specs=pl.BlockSpec(memory_space=pltpu.MemorySpace.VMEM),
            cost_estimate=cost,
        )(beta0, beta_f, x_ftl, time_f, b01)
    else:
        # Large T: tile the time axis and mark it parallel so v7x can shard the
        # rows across both TensorCores.  Per-tile VMEM (double-buffered) is
        # ~2*(F+2)*tile_t*L*4 bytes, comfortably inside v5e's 16 MiB scoped default.
        grid = (T // tile_t,)
        mu = pl.pallas_call(
            _negbin_mu_kernel,
            out_shape=jax.ShapeDtypeStruct((T, L), jnp.float32),
            grid=grid,
            in_specs=[
                pl.BlockSpec(memory_space=pltpu.MemorySpace.SMEM),           # beta_0
                pl.BlockSpec(memory_space=pltpu.MemorySpace.SMEM),           # beta
                pl.BlockSpec((F, tile_t, L), lambda i: (0, i, 0)),           # X tile
                pl.BlockSpec((tile_t, L), lambda i: (i, 0)),                 # time tile
                pl.BlockSpec((2, L), lambda i: (0, 0)),                      # b01 (resident)
            ],
            out_specs=pl.BlockSpec((tile_t, L), lambda i: (i, 0)),
            compiler_params=pltpu.CompilerParams(dimension_semantics=("parallel",)),
            cost_estimate=cost,
        )(beta0, beta_f, x_ftl, time_f, b01)

    # single scalar sigmoid -> plain JAX (no extra kernel output stream needed)
    theta = jax.nn.sigmoid(siginv_theta.reshape(()).astype(jnp.float32))
    return mu, theta


class NegativeBinomialDistribution:
    """Lightweight stand-in for torch.distributions.NegativeBinomial(total_count, probs)."""

    def __init__(self, total_count, probs):
        self.total_count = total_count   # (T, L) = mu
        self.probs = probs               # scalar theta

    @property
    def logits(self):
        return jnp.log(self.probs) - jnp.log1p(-self.probs)

    def mean(self):
        return self.total_count * self.probs / (1.0 - self.probs)

    def log_prob(self, value):
        # Plain-JAX glue (not part of the forward hot path); matches torch's formula.
        r = self.total_count
        p = self.probs
        v = value.astype(jnp.float32)
        log_unnorm = r * jnp.log1p(-p) + v * jnp.log(p)
        log_norm = (-jax.lax.lgamma(r + v) + jax.lax.lgamma(1.0 + v)
                    + jax.lax.lgamma(r))
        return log_unnorm - log_norm


class NegativeBinomialRegressionModel:
    def __init__(self, num_locations, num_fixed_effects, low=0.0, high=float("inf"),
                 key=None):
        if key is None:
            key = jax.random.PRNGKey(0)
        ks = jax.random.split(key, 8)
        self.num_locations = num_locations
        self.num_fixed_effects = num_fixed_effects
        self.low = low
        self.high = high
        # torch uses randn for these:
        self.beta_0 = jax.random.normal(ks[0], (1,), jnp.float32)
        self.beta = jax.random.normal(ks[1], (num_fixed_effects,), jnp.float32)
        # torch initializes b_0/b_1 to zeros; use small randoms so the example
        # actually exercises the random-effect terms in the kernel.
        self.b_0 = 0.1 * jax.random.normal(ks[2], (num_locations,), jnp.float32)
        self.b_1 = 0.1 * jax.random.normal(ks[3], (num_locations,), jnp.float32)
        self.log_sigma_0 = jax.random.normal(ks[4], (1,), jnp.float32)
        self.log_sigma_1 = jax.random.normal(ks[5], (1,), jnp.float32)
        self.rho = jax.random.normal(ks[6], (1,), jnp.float32)
        self.siginv_theta = jax.random.normal(ks[7], (1,), jnp.float32)

    def forward_pretransposed(self, x_ftl, time):
        """Optimized path: X already in (F, T, L) layout (bf16 or f32 in HBM)."""
        assert x_ftl.shape[0] == self.num_fixed_effects
        assert x_ftl.shape[2] == self.num_locations
        mu, theta = negative_binomial_forward_ftl(
            x_ftl, time, self.beta_0, self.beta, self.b_0, self.b_1, self.siginv_theta)
        return NegativeBinomialDistribution(total_count=mu, probs=theta)

    def forward(self, X, time):
        """Drop-in torch-layout path: X (T, L, F). Prefer forward_pretransposed in
        hot loops (avoids the HBM round-trip of the transpose)."""
        assert X.shape[1] == self.num_locations
        assert X.shape[2] == self.num_fixed_effects
        assert time.shape == X.shape[:2]
        x_ftl = jnp.transpose(X, (2, 0, 1))
        return self.forward_pretransposed(x_ftl, time)

    __call__ = forward


if __name__ == "__main__":
    # num_time_points=8 (sublanes), num_locations=128 (lane-dense), fixed effects=8
    T, L, F = 8, 128, 8
    key = jax.random.PRNGKey(0)
    kx, kt, km = jax.random.split(key, 3)

    model = NegativeBinomialRegressionModel(num_locations=L, num_fixed_effects=F, key=km)

    # X generated directly in the kernel's (F, T, L) layout, stored bf16 in HBM.
    X_ftl = jax.random.normal(kx, (F, T, L), jnp.float32).astype(jnp.bfloat16)
    time = jax.random.uniform(kt, (T, L), jnp.float32)

    # Optimized path (no wrapper transpose, bf16 X in HBM).
    dist = model.forward_pretransposed(X_ftl, time)
    jax.block_until_ready(dist.total_count)
    jax.block_until_ready(dist.probs)

    # Spec-fidelity torch-layout path (same kernel, same values).
    X_tlf = jnp.transpose(X_ftl.astype(jnp.float32), (1, 2, 0))   # (T, L, F)
    dist2 = model(X_tlf, time)
    jax.block_until_ready(dist2.total_count)

    # plain-JAX reference of the torch forward() (same bf16-quantized X values)
    fixed_effects = model.beta_0 + jnp.einsum(
        "tli,i->tl", X_tlf, model.beta, precision=jax.lax.Precision.HIGHEST)
    log_mu = fixed_effects + model.b_0[None, :] + model.b_1[None, :] * time
    mu_ref = jax.nn.softplus(log_mu)
    theta_ref = jax.nn.sigmoid(model.siginv_theta.reshape(()))

    assert dist.total_count.shape == (T, L)
    assert jnp.allclose(dist.total_count, mu_ref, atol=1e-5, rtol=1e-5)
    assert jnp.allclose(dist2.total_count, mu_ref, atol=1e-5, rtol=1e-5)
    assert jnp.allclose(dist.probs, theta_ref, atol=1e-6, rtol=1e-6)

    print("KERNEL_OK")
</pallas_src>

<mosaic_0001>
module attributes {stable_mosaic.version = 11 : i64} {
  func.func @_negbin_mu_kernel(%arg0: memref<1xf32, #tpu.memory_space<smem>>, %arg1: memref<8xf32, #tpu.memory_space<smem>>, %arg2: memref<8x8x128xbf16, #tpu.memory_space<vmem>>, %arg3: memref<8x128xf32, #tpu.memory_space<vmem>>, %arg4: memref<2x128xf32, #tpu.memory_space<vmem>>, %arg5: memref<8x128xf32, #tpu.memory_space<vmem>>) attributes {dimension_semantics = [], scalar_prefetch = 0 : i64, scratch_operands = 0 : i64, tpu.core_type = #tpu.core_type<tc>} {
    %c0 = arith.constant 0 : index
    %0 = memref.load %arg1[%c0] : memref<8xf32, #tpu.memory_space<smem>>
    %c0_0 = arith.constant 0 : index
    %c0_1 = arith.constant 0 : index
    %c0_2 = arith.constant 0 : index
    %1 = vector.load %arg2[%c0_0, %c0_1, %c0_2] : memref<8x8x128xbf16, #tpu.memory_space<vmem>>, vector<1x8x128xbf16>
    %2 = vector.shape_cast %1 : vector<1x8x128xbf16> to vector<8x128xbf16>
    %3 = arith.extf %2 : vector<8x128xbf16> to vector<8x128xf32>
    %4 = vector.broadcast %0 : f32 to vector<8x128xf32>
    %5 = arith.mulf %4, %3 : vector<8x128xf32>
    %c0_3 = arith.constant 0 : index
    %6 = memref.load %arg0[%c0_3] : memref<1xf32, #tpu.memory_space<smem>>
    %7 = vector.broadcast %6 : f32 to vector<8x128xf32>
    %8 = arith.addf %5, %7 : vector<8x128xf32>
    %c1 = arith.constant 1 : index
    %9 = memref.load %arg1[%c1] : memref<8xf32, #tpu.memory_space<smem>>
    %c1_4 = arith.constant 1 : index
    %c0_5 = arith.constant 0 : index
    %c0_6 = arith.constant 0 : index
    %10 = vector.load %arg2[%c1_4, %c0_5, %c0_6] : memref<8x8x128xbf16, #tpu.memory_space<vmem>>, vector<1x8x128xbf16>
    %11 = vector.shape_cast %10 : vector<1x8x128xbf16> to vector<8x128xbf16>
    %12 = arith.extf %11 : vector<8x128xbf16> to vector<8x128xf32>
    %13 = vector.broadcast %9 : f32 to vector<8x128xf32>
    %14 = arith.mulf %13, %12 : vector<8x128xf32>
    %15 = arith.addf %8, %14 : vector<8x128xf32>
    %c2 = arith.constant 2 : index
    %16 = memref.load %arg1[%c2] : memref<8xf32, #tpu.memory_space<smem>>
    %c2_7 = arith.constant 2 : index
    %c0_8 = arith.constant 0 : index
    %c0_9 = arith.constant 0 : index
    %17 = vector.load %arg2[%c2_7, %c0_8, %c0_9] : memref<8x8x128xbf16, #tpu.memory_space<vmem>>, vector<1x8x128xbf16>
    %18 = vector.shape_cast %17 : vector<1x8x128xbf16> to vector<8x128xbf16>
    %19 = arith.extf %18 : vector<8x128xbf16> to vector<8x128xf32>
    %20 = vector.broadcast %16 : f32 to vector<8x128xf32>
    %21 = arith.mulf %20, %19 : vector<8x128xf32>
    %22 = arith.addf %15, %21 : vector<8x128xf32>
    %c3 = arith.constant 3 : index
    %23 = memref.load %arg1[%c3] : memref<8xf32, #tpu.memory_space<smem>>
    %c3_10 = arith.constant 3 : index
    %c0_11 = arith.constant 0 : index
    %c0_12 = arith.constant 0 : index
    %24 = vector.load %arg2[%c3_10, %c0_11, %c0_12] : memref<8x8x128xbf16, #tpu.memory_space<vmem>>, vector<1x8x128xbf16>
    %25 = vector.shape_cast %24 : vector<1x8x128xbf16> to vector<8x128xbf16>
    %26 = arith.extf %25 : vector<8x128xbf16> to vector<8x128xf32>
    %27 = vector.broadcast %23 : f32 to vector<8x128xf32>
    %28 = arith.mulf %27, %26 : vector<8x128xf32>
    %29 = arith.addf %22, %28 : vector<8x128xf32>
    %c4 = arith.constant 4 : index
    %30 = memref.load %arg1[%c4] : memref<8xf32, #tpu.memory_space<smem>>
    %c4_13 = arith.constant 4 : index
    %c0_14 = arith.constant 0 : index
    %c0_15 = arith.constant 0 : index
    %31 = vector.load %arg2[%c4_13, %c0_14, %c0_15] : memref<8x8x128xbf16, #tpu.memory_space<vmem>>, vector<1x8x128xbf16>
    %32 = vector.shape_cast %31 : vector<1x8x128xbf16> to vector<8x128xbf16>
    %33 = arith.extf %32 : vector<8x128xbf16> to vector<8x128xf32>
    %34 = vector.broadcast %30 : f32 to vector<8x128xf32>
    %35 = arith.mulf %34, %33 : vector<8x128xf32>
    %36 = arith.addf %29, %35 : vector<8x128xf32>
    %c5 = arith.constant 5 : index
    %37 = memref.load %arg1[%c5] : memref<8xf32, #tpu.memory_space<smem>>
    %c5_16 = arith.constant 5 : index
    %c0_17 = arith.constant 0 : index
    %c0_18 = arith.constant 0 : index
    %38 = vector.load %arg2[%c5_16, %c0_17, %c0_18] : memref<8x8x128xbf16, #tpu.memory_space<vmem>>, vector<1x8x128xbf16>
    %39 = vector.shape_cast %38 : vector<1x8x128xbf16> to vector<8x128xbf16>
    %40 = arith.extf %39 : vector<8x128xbf16> to vector<8x128xf32>
    %41 = vector.broadcast %37 : f32 to vector<8x128xf32>
    %42 = arith.mulf %41, %40 : vector<8x128xf32>
    %43 = arith.addf %36, %42 : vector<8x128xf32>
    %c6 = arith.constant 6 : index
    %44 = memref.load %arg1[%c6] : memref<8xf32, #tpu.memory_space<smem>>
    %c6_19 = arith.constant 6 : index
    %c0_20 = arith.constant 0 : index
    %c0_21 = arith.constant 0 : index
    %45 = vector.load %arg2[%c6_19, %c0_20, %c0_21] : memref<8x8x128xbf16, #tpu.memory_space<vmem>>, vector<1x8x128xbf16>
    %46 = vector.shape_cast %45 : vector<1x8x128xbf16> to vector<8x128xbf16>
    %47 = arith.extf %46 : vector<8x128xbf16> to vector<8x128xf32>
    %48 = vector.broadcast %44 : f32 to vector<8x128xf32>
    %49 = arith.mulf %48, %47 : vector<8x128xf32>
    %50 = arith.addf %43, %49 : vector<8x128xf32>
    %c7 = arith.constant 7 : index
    %51 = memref.load %arg1[%c7] : memref<8xf32, #tpu.memory_space<smem>>
    %c7_22 = arith.constant 7 : index
    %c0_23 = arith.constant 0 : index
    %c0_24 = arith.constant 0 : index
    %52 = vector.load %arg2[%c7_22, %c0_23, %c0_24] : memref<8x8x128xbf16, #tpu.memory_space<vmem>>, vector<1x8x128xbf16>
    %53 = vector.shape_cast %52 : vector<1x8x128xbf16> to vector<8x128xbf16>
    %54 = arith.extf %53 : vector<8x128xbf16> to vector<8x128xf32>
    %55 = vector.broadcast %51 : f32 to vector<8x128xf32>
    %56 = arith.mulf %55, %54 : vector<8x128xf32>
    %57 = arith.addf %50, %56 : vector<8x128xf32>
    %c0_25 = arith.constant 0 : index
    %c0_26 = arith.constant 0 : index
    %58 = vector.load %arg4[%c0_25, %c0_26] : memref<2x128xf32, #tpu.memory_space<vmem>>, vector<2x128xf32>
    %59 = vector.extract_strided_slice %58 {offsets = [0, 0], sizes = [1, 128], strides = [1, 1]} : vector<2x128xf32> to vector<1x128xf32>
    %60 = vector.broadcast %59 : vector<1x128xf32> to vector<8x128xf32>
    %61 = arith.addf %57, %60 : vector<8x128xf32>
    %62 = vector.extract_strided_slice %58 {offsets = [1, 0], sizes = [1, 128], strides = [1, 1]} : vector<2x128xf32> to vector<1x128xf32>
    %c0_27 = arith.constant 0 : index
    %c0_28 = arith.constant 0 : index
    %63 = vector.load %arg3[%c0_27, %c0_28] : memref<8x128xf32, #tpu.memory_space<vmem>>, vector<8x128xf32>
    %64 = vector.broadcast %62 : vector<1x128xf32> to vector<8x128xf32>
    %65 = arith.mulf %64, %63 : vector<8x128xf32>
    %66 = arith.addf %61, %65 : vector<8x128xf32>
    %cst = arith.constant 0.000000e+00 : f32
    %67 = vector.broadcast %cst : f32 to vector<8x128xf32>
    %68 = arith.maximumf %66, %67 : vector<8x128xf32>
    %69 = math.absf %66 : vector<8x128xf32>
    %cst_29 = arith.constant 0.000000e+00 : f32
    %70 = vector.broadcast %cst_29 : f32 to vector<8x128xf32>
    %71 = arith.subf %70, %69 : vector<8x128xf32>
    %72 = math.exp %71 : vector<8x128xf32>
    %73 = math.log1p %72 : vector<8x128xf32>
    %74 = arith.addf %68, %73 : vector<8x128xf32>
    %c0_30 = arith.constant 0 : index
    %c0_31 = arith.constant 0 : index
    %75 = vector.load %arg5[%c0_30, %c0_31] : memref<8x128xf32, #tpu.memory_space<vmem>>, vector<8x128xf32>
    tpu.vector_store %arg5[%c0_30, %c0_31], %74 {strides = array<i32>} : memref<8x128xf32, #tpu.memory_space<vmem>>, vector<8x128xf32>,
    return
  }
}

</mosaic_0001>

<llo_original>
// kernel: tpu_custom_call.1
$region0: #{tpu_custom_call.1}
  #allocation0 [shape = 'u32[]', space=smem, size = 0x4, offset = 0x4, fixed_abs, tag = 'smem constant byte address 0x4 - core index']
  #allocation1 [shape = 'u32[144,128]{1,0:T(1,128)}', space=vmem, size = 0x12000, scoped, tag = 'internal scratch']
  #allocation2 [shape = 'f32[1]{0:T(128)S(6)}', space=smem, size = 0x200, scoped, tag = 'scoped memory for tpu_custom_call.1']
  %s0 = inlined_call_operand.<no memory space> [shape: f32[1], index: 0, kind: input, shape index: {}]
  %s1 = inlined_call_operand.vmem [shape: f32[8], index: 1, kind: input, shape index: {}]
  %s2 = inlined_call_operand.hbm [shape: bf16[8,8,128], index: 2, kind: input, shape index: {}]
  %s3 = inlined_call_operand.hbm [shape: f32[8,128], index: 3, kind: input, shape index: {}]
  %s4 = inlined_call_operand.vmem [shape: f32[2,128], index: 4, kind: input, shape index: {}]
  %s5 = inlined_call_operand.hbm [shape: f32[8,128], index: 5, kind: output, shape index: {}]
  %s6 = sld [smem:[#allocation0]]
  $region42: #{tpu_custom_call.1} parent=0
    _
  %s8 = ssub.s32 1, %s6
  %s9 = scalar_select 0, %s8, %s6
  %10 = sst [smem:[#allocation2]] %s0
  $region1: #{tpu_custom_call.1} parent=0
    #allocation3 [shape = 'u8[512]{0}', space=smem, size = 0x200, scoped, tag = 'input window, operand 1, single buffered']
    #allocation4 [shape = 's32[1]{0}', space=sflag, size = 0x4, scoped, tag = 'scoped memory for tpu_custom_call.1']
    #allocation5 [shape = 's32[1]{0}', space=sflag, size = 0x4, scoped, tag = 'scoped memory for tpu_custom_call.1']
    #allocation6 [shape = 's32[1]{0}', space=sflag, size = 0x4, scoped, tag = 'scoped memory for tpu_custom_call.1']
    #allocation7 [shape = 'u8[16384]{0}', space=vmem, size = 0x4000, scoped, tag = 'input window, operand 2, single buffered']
    #allocation8 [shape = 'u8[4096]{0}', space=vmem, size = 0x1000, scoped, tag = 'input window, operand 3, single buffered']
    #allocation9 [shape = 's32[1]{0}', space=sflag, size = 0x4, scoped, tag = 'scoped memory for tpu_custom_call.1']
    #allocation10 [shape = 'u8[4096]{0}', space=vmem, size = 0x1000, scoped, tag = 'output window, operand 0, single buffered']
    %11 = vsyncpa [#allocation6], 0
    %12 = vsyncpa [#allocation4], 0
    %13 = vsyncpa [#allocation9], 0
    %14 = vsyncpa [#allocation5], 0
    // Predicated region
    $region2: #{tpu_custom_call.1} parent=1 // pred_check
      _
    $region3: #{tpu_custom_call.1} parent=1 // pred_check_branch
      %16 = sbr.rel (0) target = $region5
    $region4: #{tpu_custom_call.1} parent=1 // pred_region
      _
    $region5: #{tpu_custom_call.1} parent=1 // pred_fallthru
      _
    // Predicated region
    $region6: #{tpu_custom_call.1} parent=1 // pred_check
      _
    $region7: #{tpu_custom_call.1} parent=1 // pred_check_branch
      %18 = sbr.rel (0) target = $region9
    $region8: #{tpu_custom_call.1} parent=1 // pred_region
      %s20 = ssub.s32 16, 16
      %21 = vsyncadd [#allocation6], %s20
      %s23 = sshll.u32 %s1, 4
      %s24 = int_to_ptr.vmem [resolvable:$true] %s23
      %26 = dma.vmem_to_smem %s24, 16, [#allocation3], [#allocation6]
    $region9: #{tpu_custom_call.1} parent=1 // pred_fallthru
      _
    // Predicated region
    $region10: #{tpu_custom_call.1} parent=1 // pred_check
      _
    $region11: #{tpu_custom_call.1} parent=1 // pred_check_branch
      %28 = sbr.rel (0) target = $region13
    $region12: #{tpu_custom_call.1} parent=1 // pred_region
      %s30 = ssub.s32 512, 512
      %31 = vsyncadd [#allocation4], %s30
      %s32 = sshll.u32 [#allocation7], 4
      %s33 = int_to_ptr.vmem [resolvable:$true] %s32
      %38 = dma.hbm_to_vmem [thread:$0]  %s2, 512, %s33, [#allocation4], 64, 64, 4
    $region13: #{tpu_custom_call.1} parent=1 // pred_fallthru
      _
    // Predicated region
    $region14: #{tpu_custom_call.1} parent=1 // pred_check
      _
    $region15: #{tpu_custom_call.1} parent=1 // pred_check_branch
      %40 = sbr.rel (0) target = $region17
    $region16: #{tpu_custom_call.1} parent=1 // pred_region
      %s42 = ssub.s32 128, 128
      %43 = vsyncadd [#allocation9], %s42
      %s45 = sshll.u32 [#allocation8], 4
      %s46 = int_to_ptr.vmem [resolvable:$true] %s45
      %48 = dma.hbm_to_vmem [thread:$0]  %s3, 128, %s46, [#allocation9]
    $region17: #{tpu_custom_call.1} parent=1 // pred_fallthru
      _
    // Predicated region
    $region18: #{tpu_custom_call.1} parent=1 // pred_check
      _
    $region19: #{tpu_custom_call.1} parent=1 // pred_check_branch
      %50 = sbr.rel (0) target = $region21
    $region20: #{tpu_custom_call.1} parent=1 // pred_region
      _
    $region21: #{tpu_custom_call.1} parent=1 // pred_fallthru
      _
    // Predicated region
    $region22: #{tpu_custom_call.1} parent=1 // pred_check
      _
    $region23: #{tpu_custom_call.1} parent=1 // pred_check_branch
      %52 = sbr.rel (0) target = $region25
    $region24: #{tpu_custom_call.1} parent=1 // pred_region
      %53 = dma.done [#allocation6], 16
    $region25: #{tpu_custom_call.1} parent=1 // pred_fallthru
      _
    // Predicated region
    $region26: #{tpu_custom_call.1} parent=1 // pred_check
      _
    $region27: #{tpu_custom_call.1} parent=1 // pred_check_branch
      %55 = sbr.rel (0) target = $region29
    $region28: #{tpu_custom_call.1} parent=1 // pred_region
      %56 = dma.done [#allocation4], 512
    $region29: #{tpu_custom_call.1} parent=1 // pred_fallthru
      _
    // Predicated region
    $region30: #{tpu_custom_call.1} parent=1 // pred_check
      _
    $region31: #{tpu_custom_call.1} parent=1 // pred_check_branch
      %58 = sbr.rel (0) target = $region33
    $region32: #{tpu_custom_call.1} parent=1 // pred_region
      %59 = dma.done [#allocation9], 128
    $region33: #{tpu_custom_call.1} parent=1 // pred_fallthru
      _
    %60 = sfence
    %s61 = sld [smem:[#allocation3]]
    %v62 = vld [vmem:[#allocation7] sm:$0xf]
    %v63 = vunpack.c.l.bf16 %v62
    %v64 = vstv %s61
    %v65 = vmul.f32 %v64, %v63
    %s66 = sld [smem:[#allocation2]]
    %v67 = vstv %s66
    %v68 = vadd.f32 %v65, %v67
    %s69 = sld [smem:[#allocation3 + $0x1]]
    %s70 = scalar_lea.vmem [#allocation7], 4
    %v71 = vld [vmem:[%s70] sm:$0xf]
    %v72 = vunpack.c.l.bf16 %v71
    %v73 = vstv %s69
    %v74 = vmul.f32 %v73, %v72
    %v75 = vadd.f32 %v68, %v74
    %s76 = sld [smem:[#allocation3 + $0x2]]
    %s77 = scalar_lea.vmem [#allocation7], 8
    %v78 = vld [vmem:[%s77] sm:$0xf]
    %v79 = vunpack.c.l.bf16 %v78
    %v80 = vstv %s76
    %v81 = vmul.f32 %v80, %v79
    %v82 = vadd.f32 %v75, %v81
    %s83 = sld [smem:[#allocation3 + $0x3]]
    %s84 = scalar_lea.vmem [#allocation7], 12
    %v85 = vld [vmem:[%s84] sm:$0xf]
    %v86 = vunpack.c.l.bf16 %v85
    %v87 = vstv %s83
    %v88 = vmul.f32 %v87, %v86
    %v89 = vadd.f32 %v82, %v88
    %s90 = sld [smem:[#allocation3 + $0x4]]
    %s91 = scalar_lea.vmem [#allocation7], 16
    %v92 = vld [vmem:[%s91] sm:$0xf]
    %v93 = vunpack.c.l.bf16 %v92
    %v94 = vstv %s90
    %v95 = vmul.f32 %v94, %v93
    %v96 = vadd.f32 %v89, %v95
    %s97 = sld [smem:[#allocation3 + $0x5]]
    %s98 = scalar_lea.vmem [#allocation7], 20
    %v99 = vld [vmem:[%s98] sm:$0xf]
    %v100 = vunpack.c.l.bf16 %v99
    %v101 = vstv %s97
    %v102 = vmul.f32 %v101, %v100
    %v103 = vadd.f32 %v96, %v102
    %s104 = sld [smem:[#allocation3 + $0x6]]
    %s105 = scalar_lea.vmem [#allocation7], 24
    %v106 = vld [vmem:[%s105] sm:$0xf]
    %v107 = vunpack.c.l.bf16 %v106
    %v108 = vstv %s104
    %v109 = vmul.f32 %v108, %v107
    %v110 = vadd.f32 %v103, %v109
    %s111 = sld [smem:[#allocation3 + $0x7]]
    %s112 = scalar_lea.vmem [#allocation7], 28
    %v113 = vld [vmem:[%s112] sm:$0xf]
    %v114 = vunpack.c.l.bf16 %v113
    %v115 = vstv %s111
    %v116 = vmul.f32 %v115, %v114
    %v117 = vadd.f32 %v110, %v116
    %v118 = vld [vmem:[%s4] sm:$0x3]
    %v119 = vlaneseq
    %v120 = vshrl.u32 %v119, 7
    %v121 = vsub.s32 0, %v120
    %v122 = vrot.slane %v118, %v121
    %v123 = vadd.f32 %v117, %v122
    %v124 = vld [vmem:[#allocation8] sm:$0xff]
    %v125 = vlaneseq
    %v126 = vshrl.u32 %v125, 7
    %v127 = vsub.s32 1, %v126
    %v128 = vrot.slane %v118, %v127
    %v129 = vmul.f32 %v128, %v124
    %v130 = vadd.f32 %v123, %v129
    %v131 = vmax.f32 %v130, 0.0
    %v132 = vand.u32 2147483647, %v130
    %v133 = vsub.f32 0.0, %v132
    %v134 = vmul.f32 %v133, 1.442695
    %v135 = vpow.pop %v134
    %v136 = vadd.f32 %v135, 1.0
    %v137 = vlog2.pop %v136
    %v138 = vmul.f32 %v137, 0.6931472
    %v139 = vmul.f32 -0.5, %v135
    %v140 = vadd.f32 %v139, 1.0
    %v141 = vmul.f32 %v140, %v135
    %v142 = vand.u32 2147483647, %v135
    %vm143 = vcmp.lt.f32.partialorder %v142, 0.0004427343
    %v144 = vsel %vm143, %v141, %v138
    %v145 = vadd.f32 %v131, %v144
    %146 = vst [vmem:[#allocation10] sm:$0xff] %v145
    // Predicated region
    $region34: #{tpu_custom_call.1} parent=1 // pred_check
      _
    $region35: #{tpu_custom_call.1} parent=1 // pred_check_branch
      %148 = sbr.rel (0) target = $region37
    $region36: #{tpu_custom_call.1} parent=1 // pred_region
      %s150 = ssub.s32 128, 128
      %151 = vsyncadd [#allocation5], %s150
      %s153 = sshll.u32 [#allocation10], 4
      %s154 = int_to_ptr.vmem [resolvable:$true] %s153
      %156 = dma.vmem_to_hbm [thread:$0]  %s154, 128, %s5, [#allocation5]
    $region37: #{tpu_custom_call.1} parent=1 // pred_fallthru
      _
    // Predicated region
    $region38: #{tpu_custom_call.1} parent=1 // pred_check
      _
    $region39: #{tpu_custom_call.1} parent=1 // pred_check_branch
      %158 = sbr.rel (0) target = $region41
    $region40: #{tpu_custom_call.1} parent=1 // pred_region
      %159 = dma.done [#allocation5], 128
    $region41: #{tpu_custom_call.1} parent=1 // pred_fallthru
      _
    %160 = vsyncpa [#allocation4], 1
    %161 = vsyncpa [#allocation9], 1
    %162 = vsyncpa [#allocation5], 1
    %163 = vsyncpa [#allocation6], 1

</llo_original>
